<compile_context>
chip_gen: v7x
topology: tpu7x:2x2x1
jax: 0.10.0
libtpu: 0.0.40
codegen_flags: <defaults>
</compile_context>

<pallas_src>
import functools

import jax
import jax.numpy as jnp
from jax.experimental import pallas as pl
from jax.experimental.pallas import tpu as pltpu


def _actor_kernel(use_bf16, ar_ref, x_ref, w1_ref, b1_ref, w2_ref, b2_ref,
                  w3_ref, b3_ref, o_ref):
    action_range = ar_ref[0]                      # SMEM scalar
    x = x_ref[...]                                # [Bt, S] batch-major tile
    if use_bf16:
        x = x.astype(jnp.bfloat16)

    # fc1 + relu: contract the feature axis of BOTH operands
    #   w1 [H, S] . x [Bt, S]  ->  [H, Bt]   (implicit x-transpose on the XLU)
    h1 = jax.lax.dot_general(w1_ref[...], x, (((1,), (1,)), ((), ())),
                             preferred_element_type=jnp.float32)
    h1 = jnp.maximum(h1 + b1_ref[...], 0.0)
    if use_bf16:
        h1 = h1.astype(jnp.bfloat16)

    # fc2 + relu:  [H, H] @ [H, Bt] -> [H, Bt]
    h2 = jnp.dot(w2_ref[...], h1, preferred_element_type=jnp.float32)
    h2 = jnp.maximum(h2 + b2_ref[...], 0.0)
    if use_bf16:
        h2 = h2.astype(jnp.bfloat16)

    # fc3 + tanh * range:  [A, H] @ [H, Bt] -> [A, Bt]
    a = jnp.dot(w3_ref[...], h2, preferred_element_type=jnp.float32)
    a = jnp.tanh(a + b3_ref[...]) * action_range

    o_ref[...] = a.astype(o_ref.dtype)            # lane-dense store


def _round_up(x, m):
    return ((x + m - 1) // m) * m


def actor_forward(state, params, action_range, *, block_b=8192, use_bf16=True,
                  feature_major_out=False):
    """state: [B, state_dim] f32. params: PyTorch-layout w[out,in], b[out].

    Returns [B, A] (PyTorch semantics) or, with feature_major_out=True, the
    kernel-native lane-dense [A, B] layout (skips the final transpose).
    """
    w1, b1 = params["w1"], params["b1"]          # [H, S], [H]
    w2, b2 = params["w2"], params["b2"]          # [H, H], [H]
    w3, b3 = params["w3"], params["b3"]          # [A, H], [A]
    B, S = state.shape
    H = w1.shape[0]
    A = w3.shape[0]

    # Batch tile: multiple of 128 lanes, large (amortise per-step overhead),
    # but at most ceil(B/2) rounded up so v7x's 2nd TensorCore gets work.
    if B > 128:
        target = _round_up(pl.cdiv(B, 2), 128)
    else:
        target = 128
    bt = min(_round_up(block_b, 128), target)
    num_tiles = pl.cdiv(B, bt)                   # ragged last block is masked

    # One-time weight cast for the MXU fast path; biases stay f32 columns.
    mm_dtype = jnp.bfloat16 if use_bf16 else jnp.float32
    w1m = w1.astype(mm_dtype)
    w2m = w2.astype(mm_dtype)
    w3m = w3.astype(mm_dtype)
    b1c = b1.reshape(H, 1).astype(jnp.float32)
    b2c = b2.reshape(H, 1).astype(jnp.float32)
    b3c = b3.reshape(A, 1).astype(jnp.float32)
    ar = jnp.asarray([action_range], dtype=jnp.float32)

    batch_in = lambda i: (i, 0)                  # state tiles along batch rows
    batch_out = lambda i: (0, i)                 # output tiles along batch lanes
    resident = lambda i: (0, 0)                  # weights stay in VMEM

    out_fm = pl.pallas_call(
        functools.partial(_actor_kernel, use_bf16),
        out_shape=jax.ShapeDtypeStruct((A, B), jnp.float32),
        grid=(num_tiles,),
        in_specs=[
            pl.BlockSpec(memory_space=pltpu.MemorySpace.SMEM),  # action_range
            pl.BlockSpec((bt, S), batch_in),                    # state (batch-major)
            pl.BlockSpec((H, S), resident),                     # w1
            pl.BlockSpec((H, 1), resident),                     # b1
            pl.BlockSpec((H, H), resident),                     # w2
            pl.BlockSpec((H, 1), resident),                     # b2
            pl.BlockSpec((A, H), resident),                     # w3
            pl.BlockSpec((A, 1), resident),                     # b3
        ],
        out_specs=pl.BlockSpec((A, bt), batch_out),
        compiler_params=pltpu.CompilerParams(
            dimension_semantics=("parallel",),
            vmem_limit_bytes=32 * 1024 * 1024,
        ),
    )(ar, state.astype(jnp.float32), w1m, b1c, w2m, b2c, w3m, b3c)

    if feature_major_out:
        return out_fm                            # [A, B] (lane-dense, no copy)
    return out_fm.T                              # [B, A] (PyTorch layout)


def init_actor_params(key, state_dim, action_dim, hidden=16):
    """Deterministic synthetic params, PyTorch nn.Linear layout & init."""
    ks = jax.random.split(key, 6)

    def linear(kw, kb, fan_in, fan_out):
        bound = fan_in ** -0.5
        w = jax.random.uniform(kw, (fan_out, fan_in), jnp.float32, -bound, bound)
        b = jax.random.uniform(kb, (fan_out,), jnp.float32, -bound, bound)
        return w, b

    w1, b1 = linear(ks[0], ks[1], state_dim, hidden)
    w2, b2 = linear(ks[2], ks[3], hidden, hidden)
    w3, b3 = linear(ks[4], ks[5], hidden, action_dim)
    return {"w1": w1, "b1": b1, "w2": w2, "b2": b2, "w3": w3, "b3": b3}


def actor_forward_ref(state, params, action_range):
    h1 = jnp.maximum(state @ params["w1"].T + params["b1"], 0.0)
    h2 = jnp.maximum(h1 @ params["w2"].T + params["b2"], 0.0)
    return jnp.tanh(h2 @ params["w3"].T + params["b3"]) * action_range


if __name__ == "__main__":
    key = jax.random.PRNGKey(0)
    k_state, k_state2, k_params = jax.random.split(key, 3)

    state_dim = 8
    action_dim = 4
    action_range = 2.0
    params = init_actor_params(k_params, state_dim, action_dim)

    # --- small batch (single ragged tile) ---
    batch = 2
    state = jax.random.normal(k_state, (batch, state_dim), jnp.float32)
    ref = actor_forward_ref(state, params, action_range)

    out = jax.block_until_ready(actor_forward(state, params, action_range))
    assert out.shape == (batch, action_dim)
    assert jnp.allclose(out, ref, atol=5e-2, rtol=5e-2), "bf16 path mismatch"

    out_f32 = jax.block_until_ready(
        actor_forward(state, params, action_range, use_bf16=False))
    assert jnp.allclose(out_f32, ref, atol=1e-5, rtol=1e-5), "f32 path mismatch"

    # --- multi-tile batch with a ragged last block (exercises edge masking) ---
    batch2 = 300
    state2 = jax.random.normal(k_state2, (batch2, state_dim), jnp.float32)
    ref2 = actor_forward_ref(state2, params, action_range)
    out2 = jax.block_until_ready(
        actor_forward(state2, params, action_range, use_bf16=False))
    assert out2.shape == (batch2, action_dim)
    assert jnp.allclose(out2, ref2, atol=1e-5, rtol=1e-5), "multi-tile mismatch"

    print("KERNEL_OK")
</pallas_src>

<mosaic_0001>
module attributes {stable_mosaic.version = 11 : i64} {
  func.func @_actor_kernel(%arg0: i32, %arg1: memref<1xf32, #tpu.memory_space<smem>>, %arg2: memref<128x8xf32, #tpu.memory_space<vmem>>, %arg3: memref<16x8xbf16, #tpu.memory_space<vmem>>, %arg4: memref<16x1xf32, #tpu.memory_space<vmem>>, %arg5: memref<16x16xbf16, #tpu.memory_space<vmem>>, %arg6: memref<16x1xf32, #tpu.memory_space<vmem>>, %arg7: memref<4x16xbf16, #tpu.memory_space<vmem>>, %arg8: memref<4x1xf32, #tpu.memory_space<vmem>>, %arg9: memref<4x128xf32, #tpu.memory_space<vmem>>) attributes {dimension_semantics = [#tpu.dimension_semantics<parallel>], iteration_bounds = array<i64: 1>, scalar_prefetch = 0 : i64, scratch_operands = 0 : i64, tpu.core_type = #tpu.core_type<tc>, window_params = [{transform_indices = @transform_0, window_bounds = array<i64: 1>}, {transform_indices = @transform_1, window_bounds = array<i64: 128, 8>}, {pipeline_mode = #tpu.pipeline_mode<synchronous>, transform_indices = @transform_2, window_bounds = array<i64: 16, 8>}, {pipeline_mode = #tpu.pipeline_mode<synchronous>, transform_indices = @transform_3, window_bounds = array<i64: 16, 1>}, {pipeline_mode = #tpu.pipeline_mode<synchronous>, transform_indices = @transform_4, window_bounds = array<i64: 16, 16>}, {pipeline_mode = #tpu.pipeline_mode<synchronous>, transform_indices = @transform_5, window_bounds = array<i64: 16, 1>}, {pipeline_mode = #tpu.pipeline_mode<synchronous>, transform_indices = @transform_6, window_bounds = array<i64: 4, 16>}, {pipeline_mode = #tpu.pipeline_mode<synchronous>, transform_indices = @transform_7, window_bounds = array<i64: 4, 1>}, {transform_indices = @transform_8, window_bounds = array<i64: 4, 128>}]} {
    %c0 = arith.constant 0 : index
    %0 = memref.load %arg1[%c0] : memref<1xf32, #tpu.memory_space<smem>>
    %c0_0 = arith.constant 0 : index
    %c0_1 = arith.constant 0 : index
    %1 = vector.load %arg2[%c0_0, %c0_1] : memref<128x8xf32, #tpu.memory_space<vmem>>, vector<128x8xf32>
    %2 = arith.truncf %1 : vector<128x8xf32> to vector<128x8xbf16>
    %c0_2 = arith.constant 0 : index
    %c0_3 = arith.constant 0 : index
    %3 = vector.load %arg3[%c0_2, %c0_3] : memref<16x8xbf16, #tpu.memory_space<vmem>>, vector<16x8xbf16>
    %cst = arith.constant dense<0.000000e+00> : vector<16x128xf32>
    %4 = tpu.matmul %3, %2, %cst {dimension_numbers = #tpu.dot_dimension_numbers<[1], [1], [0], [0], [0, 0, 1, 0], [], []>} : vector<16x8xbf16>, vector<128x8xbf16>, vector<16x128xf32> -> vector<16x128xf32>
    %c0_4 = arith.constant 0 : index
    %c0_5 = arith.constant 0 : index
    %5 = vector.load %arg4[%c0_4, %c0_5] : memref<16x1xf32, #tpu.memory_space<vmem>>, vector<16x1xf32>
    %6 = vector.broadcast %5 : vector<16x1xf32> to vector<16x128xf32>
    %7 = arith.addf %4, %6 : vector<16x128xf32>
    %cst_6 = arith.constant 0.000000e+00 : f32
    %8 = vector.broadcast %cst_6 : f32 to vector<16x128xf32>
    %9 = arith.maximumf %7, %8 : vector<16x128xf32>
    %10 = arith.truncf %9 : vector<16x128xf32> to vector<16x128xbf16>
    %c0_7 = arith.constant 0 : index
    %c0_8 = arith.constant 0 : index
    %11 = vector.load %arg5[%c0_7, %c0_8] : memref<16x16xbf16, #tpu.memory_space<vmem>>, vector<16x16xbf16>
    %cst_9 = arith.constant dense<0.000000e+00> : vector<16x128xf32>
    %12 = tpu.matmul %11, %10, %cst_9 {dimension_numbers = #tpu.dot_dimension_numbers<[1], [0], [0], [1], [0, 0, 1, 1], [], []>} : vector<16x16xbf16>, vector<16x128xbf16>, vector<16x128xf32> -> vector<16x128xf32>
    %c0_10 = arith.constant 0 : index
    %c0_11 = arith.constant 0 : index
    %13 = vector.load %arg6[%c0_10, %c0_11] : memref<16x1xf32, #tpu.memory_space<vmem>>, vector<16x1xf32>
    %14 = vector.broadcast %13 : vector<16x1xf32> to vector<16x128xf32>
    %15 = arith.addf %12, %14 : vector<16x128xf32>
    %cst_12 = arith.constant 0.000000e+00 : f32
    %16 = vector.broadcast %cst_12 : f32 to vector<16x128xf32>
    %17 = arith.maximumf %15, %16 : vector<16x128xf32>
    %18 = arith.truncf %17 : vector<16x128xf32> to vector<16x128xbf16>
    %c0_13 = arith.constant 0 : index
    %c0_14 = arith.constant 0 : index
    %19 = vector.load %arg7[%c0_13, %c0_14] : memref<4x16xbf16, #tpu.memory_space<vmem>>, vector<4x16xbf16>
    %cst_15 = arith.constant dense<0.000000e+00> : vector<4x128xf32>
    %20 = tpu.matmul %19, %18, %cst_15 {dimension_numbers = #tpu.dot_dimension_numbers<[1], [0], [0], [1], [0, 0, 1, 1], [], []>} : vector<4x16xbf16>, vector<16x128xbf16>, vector<4x128xf32> -> vector<4x128xf32>
    %c0_16 = arith.constant 0 : index
    %c0_17 = arith.constant 0 : index
    %21 = vector.load %arg8[%c0_16, %c0_17] : memref<4x1xf32, #tpu.memory_space<vmem>>, vector<4x1xf32>
    %22 = vector.broadcast %21 : vector<4x1xf32> to vector<4x128xf32>
    %23 = arith.addf %20, %22 : vector<4x128xf32>
    %24 = math.tanh %23 : vector<4x128xf32>
    %25 = vector.broadcast %0 : f32 to vector<4x128xf32>
    %26 = arith.mulf %24, %25 : vector<4x128xf32>
    %c0_18 = arith.constant 0 : index
    %c0_19 = arith.constant 0 : index
    %27 = vector.load %arg9[%c0_18, %c0_19] : memref<4x128xf32, #tpu.memory_space<vmem>>, vector<4x128xf32>
    tpu.vector_store %arg9[%c0_18, %c0_19], %26 {strides = array<i32>} : memref<4x128xf32, #tpu.memory_space<vmem>>, vector<4x128xf32>,
    return
  }
  func.func @transform_0(%arg0: i32) -> i32 {
    %c0_i32 = arith.constant 0 : i32
    %c0_i32_0 = arith.constant 0 : i32
    return %c0_i32 : i32
  }
  func.func @transform_1(%arg0: i32) -> (i32, i32) {
    %c0_i32 = arith.constant 0 : i32
    %c0_i32_0 = arith.constant 0 : i32
    return %arg0, %c0_i32 : i32, i32
  }
  func.func @transform_2(%arg0: i32) -> (i32, i32) {
    %c0_i32 = arith.constant 0 : i32
    %c0_i32_0 = arith.constant 0 : i32
    %c0_i32_1 = arith.constant 0 : i32
    return %c0_i32, %c0_i32_0 : i32, i32
  }
  func.func @transform_3(%arg0: i32) -> (i32, i32) {
    %c0_i32 = arith.constant 0 : i32
    %c0_i32_0 = arith.constant 0 : i32
    %c0_i32_1 = arith.constant 0 : i32
    return %c0_i32, %c0_i32_0 : i32, i32
  }
  func.func @transform_4(%arg0: i32) -> (i32, i32) {
    %c0_i32 = arith.constant 0 : i32
    %c0_i32_0 = arith.constant 0 : i32
    %c0_i32_1 = arith.constant 0 : i32
    return %c0_i32, %c0_i32_0 : i32, i32
  }
  func.func @transform_5(%arg0: i32) -> (i32, i32) {
    %c0_i32 = arith.constant 0 : i32
    %c0_i32_0 = arith.constant 0 : i32
    %c0_i32_1 = arith.constant 0 : i32
    return %c0_i32, %c0_i32_0 : i32, i32
  }
  func.func @transform_6(%arg0: i32) -> (i32, i32) {
    %c0_i32 = arith.constant 0 : i32
    %c0_i32_0 = arith.constant 0 : i32
    %c0_i32_1 = arith.constant 0 : i32
    return %c0_i32, %c0_i32_0 : i32, i32
  }
  func.func @transform_7(%arg0: i32) -> (i32, i32) {
    %c0_i32 = arith.constant 0 : i32
    %c0_i32_0 = arith.constant 0 : i32
    %c0_i32_1 = arith.constant 0 : i32
    return %c0_i32, %c0_i32_0 : i32, i32
  }
  func.func @transform_8(%arg0: i32) -> (i32, i32) {
    %c0_i32 = arith.constant 0 : i32
    %c0_i32_0 = arith.constant 0 : i32
    return %c0_i32, %arg0 : i32, i32
  }
}

</mosaic_0001>

<llo_original>
// kernel: tpu_custom_call.1
$region0: #{tpu_custom_call.1}
  #allocation0 [shape = 'u32[]', space=smem, size = 0x4, offset = 0x4, fixed_abs, tag = 'smem constant byte address 0x4 - core index']
  #allocation1 [shape = 'u32[144,128]{1,0:T(1,128)}', space=vmem, size = 0x12000, scoped, tag = 'internal scratch']
  #allocation2 [shape = 'f32[1]{0:T(128)S(6)}', space=smem, size = 0x200, scoped, tag = 'scoped memory for tpu_custom_call.1']
  %s0 = inlined_call_operand.<no memory space> [shape: f32[1], index: 0, kind: input, shape index: {}]
  %s1 = inlined_call_operand.vmem [shape: f32[2,8], index: 1, kind: input, shape index: {}]
  %s2 = inlined_call_operand.vmem [shape: bf16[16,8], index: 2, kind: input, shape index: {}]
  %s3 = inlined_call_operand.vmem [shape: f32[16,1], index: 3, kind: input, shape index: {}]
  %s4 = inlined_call_operand.vmem [shape: bf16[16,16], index: 4, kind: input, shape index: {}]
  %s5 = inlined_call_operand.vmem [shape: f32[16,1], index: 5, kind: input, shape index: {}]
  %s6 = inlined_call_operand.vmem [shape: bf16[4,16], index: 6, kind: input, shape index: {}]
  %s7 = inlined_call_operand.vmem [shape: f32[4,1], index: 7, kind: input, shape index: {}]
  %s8 = inlined_call_operand.vmem [shape: f32[4,2], index: 8, kind: output, shape index: {}]
  %s9 = sld [smem:[#allocation0]]
  $region42: #{tpu_custom_call.1} parent=0
    _
  %s11 = ssub.s32 1, %s9
  %s12 = scalar_select 0, %s11, %s9
  %13 = sst [smem:[#allocation2]] %s0
  // Predicated region
  $region2: #{tpu_custom_call.1} parent=0 // pred_check
    _
  $region3: #{tpu_custom_call.1} parent=0 // pred_check_branch
    %15 = sbr.rel (0) target = $region5
  $region4: #{tpu_custom_call.1} parent=0 // pred_region
    _
  $region5: #{tpu_custom_call.1} parent=0 // pred_fallthru
    _
  // Predicated region
  $region6: #{tpu_custom_call.1} parent=0 // pred_check
    _
  $region7: #{tpu_custom_call.1} parent=0 // pred_check_branch
    %17 = sbr.rel (0) target = $region9
  $region8: #{tpu_custom_call.1} parent=0 // pred_region
    _
  $region9: #{tpu_custom_call.1} parent=0 // pred_fallthru
    _
  // Predicated region
  $region10: #{tpu_custom_call.1} parent=0 // pred_check
    _
  $region11: #{tpu_custom_call.1} parent=0 // pred_check_branch
    %19 = sbr.rel (0) target = $region13
  $region12: #{tpu_custom_call.1} parent=0 // pred_region
    _
  $region13: #{tpu_custom_call.1} parent=0 // pred_fallthru
    _
  // Predicated region
  $region14: #{tpu_custom_call.1} parent=0 // pred_check
    _
  $region15: #{tpu_custom_call.1} parent=0 // pred_check_branch
    %21 = sbr.rel (0) target = $region17
  $region16: #{tpu_custom_call.1} parent=0 // pred_region
    _
  $region17: #{tpu_custom_call.1} parent=0 // pred_fallthru
    _
  // Predicated region
  $region18: #{tpu_custom_call.1} parent=0 // pred_check
    _
  $region19: #{tpu_custom_call.1} parent=0 // pred_check_branch
    %23 = sbr.rel (0) target = $region21
  $region20: #{tpu_custom_call.1} parent=0 // pred_region
    _
  $region21: #{tpu_custom_call.1} parent=0 // pred_fallthru
    _
  // Predicated region
  $region22: #{tpu_custom_call.1} parent=0 // pred_check
    _
  $region23: #{tpu_custom_call.1} parent=0 // pred_check_branch
    %25 = sbr.rel (0) target = $region25
  $region24: #{tpu_custom_call.1} parent=0 // pred_region
    _
  $region25: #{tpu_custom_call.1} parent=0 // pred_fallthru
    _
  // Predicated region
  $region26: #{tpu_custom_call.1} parent=0 // pred_check
    _
  $region27: #{tpu_custom_call.1} parent=0 // pred_check_branch
    %27 = sbr.rel (0) target = $region29
  $region28: #{tpu_custom_call.1} parent=0 // pred_region
    _
  $region29: #{tpu_custom_call.1} parent=0 // pred_fallthru
    _
  // Predicated region
  $region30: #{tpu_custom_call.1} parent=0 // pred_check
    _
  $region31: #{tpu_custom_call.1} parent=0 // pred_check_branch
    %29 = sbr.rel (0) target = $region33
  $region32: #{tpu_custom_call.1} parent=0 // pred_region
    _
  $region33: #{tpu_custom_call.1} parent=0 // pred_fallthru
    _
  %s31 = sld [smem:[#allocation2]]
  %v32 = vld [vmem:[%s1] sm:$0xff]
  %v33 = vld [vmem:[%s1 + $0x8] sm:$0xff]
  %v34 = vld [vmem:[%s1 + $0x10] sm:$0xff]
  %v35 = vld [vmem:[%s1 + $0x18] sm:$0xff]
  %v36 = vld [vmem:[%s1 + $0x20] sm:$0xff]
  %v37 = vld [vmem:[%s1 + $0x28] sm:$0xff]
  %v38 = vld [vmem:[%s1 + $0x30] sm:$0xff]
  %v39 = vld [vmem:[%s1 + $0x38] sm:$0xff]
  %v40 = vld [vmem:[%s1 + $0x40] sm:$0xff]
  %v41 = vld [vmem:[%s1 + $0x48] sm:$0xff]
  %v42 = vld [vmem:[%s1 + $0x50] sm:$0xff]
  %v43 = vld [vmem:[%s1 + $0x58] sm:$0xff]
  %v44 = vld [vmem:[%s1 + $0x60] sm:$0xff]
  %v45 = vld [vmem:[%s1 + $0x68] sm:$0xff]
  %v46 = vld [vmem:[%s1 + $0x70] sm:$0xff]
  %v47 = vld [vmem:[%s1 + $0x78] sm:$0xff]
  %v48 = vpack.c.bf16 %v33, %v32
  %v49 = vpack.c.bf16 %v35, %v34
  %v50 = vpack.c.bf16 %v37, %v36
  %v51 = vpack.c.bf16 %v39, %v38
  %v52 = vpack.c.bf16 %v41, %v40
  %v53 = vpack.c.bf16 %v43, %v42
  %v54 = vpack.c.bf16 %v45, %v44
  %v55 = vpack.c.bf16 %v47, %v46
  %v56 = vld [vmem:[%s2] sm:$0xf]
  %v57 = vld [vmem:[%s2 + $0x4] sm:$0xf]
  %v58 = vld [vmem:[%s3] sm:$0xff]
  %v59 = vld [vmem:[%s3 + $0x8] sm:$0xff]
  %61 = vset.pattern.permute.xlu0 0
  %62 = vperm.xlu0 %61, %v58
  %v63 = vpop.permute.xlu0 %62
  %66 = vset.pattern.permute.xlu0 0
  %67 = vperm.xlu0 %66, %v59
  %v68 = vpop.permute.xlu0 %67
  %v72 = vunpack.c.l.b16 %v56
  %v73 = vunpack.c.l.b16 %v57
  %v74 = vpack.c.b16 %v73, %v72
  %vm75 = vcmask 64512
  %v77 = vsel %vm75, %v74, 0
  %v80 = vsel %vm75, %v48, 0
  %v83 = vsel %vm75, %v49, 0
  %v86 = vsel %vm75, %v50, 0
  %v89 = vsel %vm75, %v51, 0
  %v92 = vsel %vm75, %v52, 0
  %v95 = vsel %vm75, %v53, 0
  %v98 = vsel %vm75, %v54, 0
  %v101 = vsel %vm75, %v55, 0
  %103 = vmatprep.subr.bf16.mxu0 0
  %104 = vmatpush1.bf16.xpose.msra.mxu0 %v80
  %105 = vmatprep.subr.bf16.mxu0 0
  %106 = vmatpush1.bf16.xpose.msra.mxu0 %v83
  %107 = vmatprep.subr.bf16.mxu0 0
  %108 = vmatpush1.bf16.xpose.msra.mxu0 %v86
  %109 = vmatprep.subr.bf16.mxu0 0
  %110 = vmatpush1.bf16.xpose.msra.mxu0 %v89
  %111 = vmatprep.subr.bf16.mxu0 0
  %112 = vmatpush1.bf16.xpose.msra.mxu0 %v92
  %113 = vmatprep.subr.bf16.mxu0 0
  %114 = vmatpush1.bf16.xpose.msra.mxu0 %v95
  %115 = vmatprep.subr.bf16.mxu0 0
  %116 = vmatpush1.bf16.xpose.msra.mxu0 %v98
  %117 = vmatprep.subr.bf16.mxu0 0
  %118 = vmatpush1.bf16.xpose.msra.mxu0 %v101
  %119 = vmatprep.subr.bf16.mxu0 0
  %120 = vmatpush1.bf16.xpose.msra.mxu0 0
  %121 = vmatprep.subr.bf16.mxu0 0
  %122 = vmatpush1.bf16.xpose.msra.mxu0 0
  %123 = vmatprep.subr.bf16.mxu0 0
  %124 = vmatpush1.bf16.xpose.msra.mxu0 0
  %125 = vmatprep.subr.bf16.mxu0 0
  %126 = vmatpush1.bf16.xpose.msra.mxu0 0
  %127 = vmatprep.subr.bf16.mxu0 0
  %128 = vmatpush1.bf16.xpose.msra.mxu0 0
  %129 = vmatprep.subr.bf16.mxu0 0
  %130 = vmatpush1.bf16.xpose.msra.mxu0 0
  %131 = vmatprep.subr.bf16.mxu0 0
  %132 = vmatpush1.bf16.xpose.msra.mxu0 0
  %133 = vmatprep.subr.bf16.mxu0 0
  %134 = vmatpush1.bf16.xpose.msra.mxu0 0
  %135 = vmatprep.mubr.bf16.mxu0 0
  %136 = vmatmul.mubr.bf16.gmra.mrb[0].mxu0 %v77
  %v137 = vpop.f32.mrb[0].mxu0
  %v138 = vadd.f32 %v63, %v137
  %v139 = vpop.f32.mrb[0].mxu0
  %v140 = vpop.f32.mrb[0].mxu0
  %v141 = vadd.f32 %v68, %v140
  %v142 = vpop.f32.mrb[0].mxu0
  %143 = vdwg.mxu0
  %v144 = vmax.f32 %v138, 0.0
  %v145 = vmax.f32 %v141, 0.0
  %v146 = vpack.c.bf16 %v145, %v144
  %v147 = vld [vmem:[%s4] sm:$0xf]
  %v148 = vld [vmem:[%s4 + $0x4] sm:$0xf]
  %v149 = vld [vmem:[%s5] sm:$0xff]
  %v150 = vld [vmem:[%s5 + $0x8] sm:$0xff]
  %152 = vset.pattern.permute.xlu0 0
  %153 = vperm.xlu0 %152, %v149
  %v154 = vpop.permute.xlu0 %153
  %157 = vset.pattern.permute.xlu0 0
  %158 = vperm.xlu0 %157, %v150
  %v159 = vpop.permute.xlu0 %158
  %v163 = vunpack.c.l.b16 %v147
  %v164 = vunpack.c.l.b16 %v148
  %v165 = vpack.c.b16 %v164, %v163
  %vm166 = vcmask 130048
  %v168 = vsel %vm166, %v165, 0
  %170 = vmatprep.subr.bf16.mxu0 0
  %171 = vmatpush1.bf16.msra.mxu0 %v146
  %172 = vmatprep.subr.bf16.mxu0 0
  %173 = vmatpush1.bf16.msra.mxu0 0
  %174 = vmatprep.subr.bf16.mxu0 0
  %175 = vmatpush1.bf16.msra.mxu0 0
  %176 = vmatprep.subr.bf16.mxu0 0
  %177 = vmatpush1.bf16.msra.mxu0 0
  %178 = vmatprep.subr.bf16.mxu0 0
  %179 = vmatpush1.bf16.msra.mxu0 0
  %180 = vmatprep.subr.bf16.mxu0 0
  %181 = vmatpush1.bf16.msra.mxu0 0
  %182 = vmatprep.subr.bf16.mxu0 0
  %183 = vmatpush1.bf16.msra.mxu0 0
  %184 = vmatprep.subr.bf16.mxu0 0
  %185 = vmatpush1.bf16.msra.mxu0 0
  %186 = vmatprep.subr.bf16.mxu0 0
  %187 = vmatpush1.bf16.msra.mxu0 0
  %188 = vmatprep.subr.bf16.mxu0 0
  %189 = vmatpush1.bf16.msra.mxu0 0
  %190 = vmatprep.subr.bf16.mxu0 0
  %191 = vmatpush1.bf16.msra.mxu0 0
  %192 = vmatprep.subr.bf16.mxu0 0
  %193 = vmatpush1.bf16.msra.mxu0 0
  %194 = vmatprep.subr.bf16.mxu0 0
  %195 = vmatpush1.bf16.msra.mxu0 0
  %196 = vmatprep.subr.bf16.mxu0 0
  %197 = vmatpush1.bf16.msra.mxu0 0
  %198 = vmatprep.subr.bf16.mxu0 0
  %199 = vmatpush1.bf16.msra.mxu0 0
  %200 = vmatprep.subr.bf16.mxu0 0
  %201 = vmatpush1.bf16.msra.mxu0 0
  %202 = vmatprep.mubr.bf16.mxu0 0
  %203 = vmatmul.mubr.bf16.gmra.mrb[0].mxu0 %v168
  %v204 = vpop.f32.mrb[0].mxu0
  %v205 = vadd.f32 %v154, %v204
  %v206 = vpop.f32.mrb[0].mxu0
  %v207 = vpop.f32.mrb[0].mxu0
  %v208 = vadd.f32 %v159, %v207
  %v209 = vpop.f32.mrb[0].mxu0
  %210 = vdwg.mxu0
  %v211 = vmax.f32 %v205, 0.0
  %v212 = vmax.f32 %v208, 0.0
  %v213 = vpack.c.bf16 %v212, %v211
  %v214 = vld [vmem:[%s6] sm:$0x3]
  %v215 = vld [vmem:[%s7] sm:$0xf]
  %217 = vset.pattern.permute.xlu0 0
  %218 = vperm.xlu0 %217, %v215
  %v219 = vpop.permute.xlu0 %218
  %v222 = vsel %vm166, %v214, 0
  %224 = vmatprep.subr.bf16.mxu0 0
  %225 = vmatpush1.bf16.msra.mxu0 %v213
  %226 = vmatprep.subr.bf16.mxu0 0
  %227 = vmatpush1.bf16.msra.mxu0 0
  %228 = vmatprep.subr.bf16.mxu0 0
  %229 = vmatpush1.bf16.msra.mxu0 0
  %230 = vmatprep.subr.bf16.mxu0 0
  %231 = vmatpush1.bf16.msra.mxu0 0
  %232 = vmatprep.subr.bf16.mxu0 0
  %233 = vmatpush1.bf16.msra.mxu0 0
  %234 = vmatprep.subr.bf16.mxu0 0
  %235 = vmatpush1.bf16.msra.mxu0 0
  %236 = vmatprep.subr.bf16.mxu0 0
  %237 = vmatpush1.bf16.msra.mxu0 0
  %238 = vmatprep.subr.bf16.mxu0 0
  %239 = vmatpush1.bf16.msra.mxu0 0
  %240 = vmatprep.subr.bf16.mxu0 0
  %241 = vmatpush1.bf16.msra.mxu0 0
  %242 = vmatprep.subr.bf16.mxu0 0
  %243 = vmatpush1.bf16.msra.mxu0 0
  %244 = vmatprep.subr.bf16.mxu0 0
  %245 = vmatpush1.bf16.msra.mxu0 0
  %246 = vmatprep.subr.bf16.mxu0 0
  %247 = vmatpush1.bf16.msra.mxu0 0
  %248 = vmatprep.subr.bf16.mxu0 0
  %249 = vmatpush1.bf16.msra.mxu0 0
  %250 = vmatprep.subr.bf16.mxu0 0
  %251 = vmatpush1.bf16.msra.mxu0 0
  %252 = vmatprep.subr.bf16.mxu0 0
  %253 = vmatpush1.bf16.msra.mxu0 0
  %254 = vmatprep.subr.bf16.mxu0 0
  %255 = vmatpush1.bf16.msra.mxu0 0
  %256 = vmatprep.mubr.bf16.mxu0 0
  %257 = vmatmul.mubr.bf16.gmra.mrb[0].mxu0 %v222
  %v258 = vpop.f32.mrb[0].mxu0
  %v259 = vadd.f32 %v219, %v258
  %v260 = vpop.f32.mrb[0].mxu0
  %v261 = vpop.f32.mrb[0].mxu0
  %v262 = vpop.f32.mrb[0].mxu0
  %263 = vdwg.mxu0
  %v264 = vtanh.pop %v259
  %v265 = vstv %s31
  %v266 = vmul.f32 %v264, %v265
  %267 = vst [vmem:[%s8] sm:$0xf] %v266
  // Predicated region
  $region34: #{tpu_custom_call.1} parent=0 // pred_check
    _
  $region35: #{tpu_custom_call.1} parent=0 // pred_check_branch
    %269 = sbr.rel (0) target = $region37
  $region36: #{tpu_custom_call.1} parent=0 // pred_region
    _
  $region37: #{tpu_custom_call.1} parent=0 // pred_fallthru
    _
  // Predicated region
  $region38: #{tpu_custom_call.1} parent=0 // pred_check
    _
  $region39: #{tpu_custom_call.1} parent=0 // pred_check_branch
    %271 = sbr.rel (0) target = $region41
  $region40: #{tpu_custom_call.1} parent=0 // pred_region
    _
  $region41: #{tpu_custom_call.1} parent=0 // pred_fallthru
    _

</llo_original>
